<compile_context>
chip_gen: v5e
topology: v5e:2x2
jax: 0.10.0
libtpu: 0.0.40
codegen_flags: <defaults>
</compile_context>

<pallas_src>
import numpy as np
import jax
import jax.numpy as jnp
from jax.experimental import pallas as pl
from jax.experimental.pallas import tpu as pltpu

HOP_LENGTH = 64
N_FFT = 128
WIN_LEN = 128
N_FREQ = N_FFT // 2 + 1        # 65 (onesided)
_TF_MAX = 2048                 # frame-tile cap (multiple of 8)


def _make_consts():
    """Fused, window/envelope-folded forward and inverse DFT matrices."""
    n = np.arange(N_FFT)
    # periodic hann == scipy.signal.get_window('hann', WIN_LEN, fftbins=True)
    win = 0.5 - 0.5 * np.cos(2.0 * np.pi * n / WIN_LEN)

    # forward: re = frames @ (win*cos), im = frames @ (-win*sin); freq axis
    # zero-padded 65 -> 128 so everything is lane-dense; packed [re | im].
    k = np.arange(N_FREQ)
    ang_f = 2.0 * np.pi * np.outer(n, k) / N_FFT               # [128, 65]
    dc = np.zeros((N_FFT, N_FFT))
    ds = np.zeros((N_FFT, N_FFT))
    dc[:, :N_FREQ] = win[:, None] * np.cos(ang_f)
    ds[:, :N_FREQ] = -win[:, None] * np.sin(ang_f)
    w_fwd = np.concatenate([dc, ds], axis=1)                    # [128, 256]

    # inverse: onesided irfft * synthesis window; stacked [cos ; sin].
    wk = np.full((N_FREQ,), 2.0)
    wk[0] = 1.0
    wk[-1] = 1.0                                                # DC / Nyquist
    ang_i = 2.0 * np.pi * np.outer(k, n) / N_FFT                # [65, 128]
    ic = np.zeros((N_FFT, N_FFT))
    is_ = np.zeros((N_FFT, N_FFT))
    ic[:N_FREQ] = (wk[:, None] / N_FFT) * np.cos(ang_i) * win[None, :]
    is_[:N_FREQ] = -(wk[:, None] / N_FFT) * np.sin(ang_i) * win[None, :]

    # istft OLA envelope (sum of win^2 over the two overlapping frames) is
    # periodic with period HOP inside the trimmed output -> fold 1/env into
    # the inverse weight columns (column n scaled by 1/env[n % HOP]).
    env = win[:HOP_LENGTH] ** 2 + win[HOP_LENGTH:] ** 2
    inv_env = np.tile(1.0 / env, 2)                             # [128]
    ic *= inv_env[None, :]
    is_ *= inv_env[None, :]
    w_inv = np.concatenate([ic, is_], axis=0)                   # [256, 128]

    return w_fwd.astype(np.float32), w_inv.astype(np.float32)


_W_FWD_NP, _W_INV_NP = _make_consts()


def _round_up(a, m):
    return -(-a // m) * m


def _stft_roundtrip_kernel(frames_ref, wfwd_ref, winv_ref, out_ref):
    """Windowed DFT -> (mag, phase) round trip -> windowed iDFT, one tile."""
    frames = frames_ref[...]                                    # [TF, 128] bf16

    # fused forward onesided DFT: [TF,128] @ [128,256] -> [re | im] in f32.
    zw = jnp.dot(frames, wfwd_ref[...], preferred_element_type=jnp.float32)
    re = zw[:, :N_FFT]
    im = zw[:, N_FFT:]

    # magnitude/phase round trip (torch: abs + angle, then mag*exp(i*phase)):
    #   mag*cos(angle) = re * power/(power+eps),  same for im.
    power = re * re + im * im
    s = power / (power + 1e-30)                                 # EUP reciprocal
    zi = (zw * jnp.concatenate([s, s], axis=-1)).astype(jnp.bfloat16)

    # fused inverse onesided DFT (synthesis window + 1/OLA-env folded in):
    # [TF,256] @ [256,128] -> per-frame time-domain contribution.
    out = jnp.dot(zi, winv_ref[...], preferred_element_type=jnp.float32)
    out_ref[...] = out.astype(out_ref.dtype)


@jax.jit
def torch_stft_forward(x):
    """Equivalent of TorchSTFT.forward: istft(stft(x)) with hann/128/64."""
    B, L = x.shape
    if L % HOP_LENGTH != 0:
        # TODO(synk): torch supports arbitrary L; this fast framing path
        # requires L % HOP_LENGTH == 0.
        raise ValueError("torch_stft_forward requires L % HOP_LENGTH == 0")
    if L <= N_FFT // 2:
        raise ValueError("reflect padding requires L > N_FFT // 2")
    pad = N_FFT // 2
    n_frames = 1 + L // HOP_LENGTH

    # --- glue: bf16 cast + center reflect-pad + hop==N_FFT/2 framing --------
    xb = x.astype(jnp.bfloat16)                       # MXU sees bf16 anyway
    xp = jnp.pad(xb, ((0, 0), (pad, pad)), mode="reflect")   # [B, L+128]
    xc = xp.reshape(B, n_frames + 1, HOP_LENGTH)              # 64-sample chunks
    frames = jnp.concatenate([xc[:, :-1, :], xc[:, 1:, :]], axis=-1)  # [B,nf,128]

    # frame-tile: multiple of 8, large to amortize per-step overhead; when
    # B == 1 keep >= 2 grid steps so both v7x TensorCores get work.
    TF = min(_TF_MAX, _round_up(n_frames, 8))
    if B == 1 and n_frames > 8 and _round_up(n_frames, TF) // TF < 2:
        TF = _round_up(-(-n_frames // 2), 8)
    NFp = _round_up(n_frames, TF)
    if NFp != n_frames:
        frames = jnp.pad(frames, ((0, 0), (0, NFp - n_frames), (0, 0)))

    w_fwd = jnp.asarray(_W_FWD_NP, dtype=jnp.bfloat16)        # [128, 256]
    w_inv = jnp.asarray(_W_INV_NP, dtype=jnp.bfloat16)        # [256, 128]

    flops = 2 * 2 * B * NFp * N_FFT * (2 * N_FFT) + 8 * B * NFp * N_FFT
    bytes_accessed = (2 * B * NFp * N_FFT          # frames in (bf16)
                      + 2 * B * NFp * N_FFT        # frames out (bf16)
                      + 2 * 2 * (N_FFT * 2 * N_FFT))  # both weights (bf16)
    cost = pl.CostEstimate(flops=flops,
                           transcendentals=B * NFp * N_FFT,
                           bytes_accessed=bytes_accessed)

    # --- Pallas kernel: per (batch, frame-tile) processing -------------------
    out_frames = pl.pallas_call(
        _stft_roundtrip_kernel,
        out_shape=jax.ShapeDtypeStruct((B, NFp, N_FFT), jnp.bfloat16),
        grid=(B, NFp // TF),
        in_specs=[
            pl.BlockSpec((None, TF, N_FFT), lambda b, t: (b, t, 0)),
            pl.BlockSpec((N_FFT, 2 * N_FFT), lambda b, t: (0, 0)),
            pl.BlockSpec((2 * N_FFT, N_FFT), lambda b, t: (0, 0)),
        ],
        out_specs=pl.BlockSpec((None, TF, N_FFT), lambda b, t: (b, t, 0)),
        compiler_params=pltpu.CompilerParams(
            dimension_semantics=("parallel", "parallel")),
        cost_estimate=cost,
    )(frames, w_fwd, w_inv)

    # --- glue: overlap-add (shifted 64-sample half add; 1/env already folded)
    of = out_frames[:, :n_frames, :].astype(jnp.float32)
    y = (of[:, 1:, :HOP_LENGTH] + of[:, :-1, HOP_LENGTH:]).reshape(
        B, (n_frames - 1) * HOP_LENGTH)
    return y


if __name__ == "__main__":
    key = jax.random.PRNGKey(0)
    B, L = 2, 256                          # L multiple of HOP_LENGTH
    x = jax.random.normal(key, (B, L), dtype=jnp.float32)
    # Quantise the test signal to the bf16 grid: the pipeline feeds bf16
    # operands to the MXU anyway, so the round-trip check below measures the
    # DFT/mag-phase/iDFT/OLA chain rather than input quantisation.
    x = x.astype(jnp.bfloat16).astype(jnp.float32)

    y = jax.block_until_ready(torch_stft_forward(x))

    assert y.shape == (B, L), y.shape
    # istft(stft(x)) is an exact round trip for COLA windows; with bf16
    # weights/operands/output the residual error is ~1e-2 absolute worst case.
    err = np.abs(np.asarray(y) - np.asarray(x))
    max_err = float(err.max())
    mean_err = float(err.mean())
    assert max_err < 5e-2 and mean_err < 1e-2, (max_err, mean_err)
    print("KERNEL_OK")
</pallas_src>

<mosaic_0001>
module attributes {stable_mosaic.version = 11 : i64} {
  func.func @_stft_roundtrip_kernel(%arg0: i32, %arg1: i32, %arg2: memref<1x8x128xbf16, #tpu.memory_space<vmem>>, %arg3: memref<128x256xbf16, #tpu.memory_space<vmem>>, %arg4: memref<256x128xbf16, #tpu.memory_space<vmem>>, %arg5: memref<1x8x128xbf16, #tpu.memory_space<vmem>>) attributes {dimension_semantics = [#tpu.dimension_semantics<parallel>, #tpu.dimension_semantics<parallel>], iteration_bounds = array<i64: 2, 1>, scalar_prefetch = 0 : i64, scratch_operands = 0 : i64, tpu.core_type = #tpu.core_type<tc>, window_params = [{transform_indices = @transform_0, window_bounds = array<i64: 1, 8, 128>}, {pipeline_mode = #tpu.pipeline_mode<synchronous>, transform_indices = @transform_1, window_bounds = array<i64: 128, 256>}, {pipeline_mode = #tpu.pipeline_mode<synchronous>, transform_indices = @transform_2, window_bounds = array<i64: 256, 128>}, {transform_indices = @transform_3, window_bounds = array<i64: 1, 8, 128>}]} {
    %c0 = arith.constant 0 : index
    %c0_0 = arith.constant 0 : index
    %c0_1 = arith.constant 0 : index
    %0 = vector.load %arg2[%c0, %c0_0, %c0_1] : memref<1x8x128xbf16, #tpu.memory_space<vmem>>, vector<1x8x128xbf16>
    %1 = vector.shape_cast %0 : vector<1x8x128xbf16> to vector<8x128xbf16>
    %c0_2 = arith.constant 0 : index
    %c0_3 = arith.constant 0 : index
    %2 = vector.load %arg3[%c0_2, %c0_3] : memref<128x256xbf16, #tpu.memory_space<vmem>>, vector<128x256xbf16>
    %cst = arith.constant dense<0.000000e+00> : vector<8x256xf32>
    %3 = tpu.matmul %1, %2, %cst {dimension_numbers = #tpu.dot_dimension_numbers<[1], [0], [0], [1], [0, 0, 1, 1], [], []>} : vector<8x128xbf16>, vector<128x256xbf16>, vector<8x256xf32> -> vector<8x256xf32>
    %4 = vector.extract_strided_slice %3 {offsets = [0, 0], sizes = [8, 128], strides = [1, 1]} : vector<8x256xf32> to vector<8x128xf32>
    %5 = vector.extract_strided_slice %3 {offsets = [0, 128], sizes = [8, 128], strides = [1, 1]} : vector<8x256xf32> to vector<8x128xf32>
    %6 = arith.mulf %4, %4 : vector<8x128xf32>
    %7 = arith.mulf %5, %5 : vector<8x128xf32>
    %8 = arith.addf %6, %7 : vector<8x128xf32>
    %cst_4 = arith.constant 1.000000e-30 : f32
    %9 = vector.broadcast %cst_4 : f32 to vector<8x128xf32>
    %10 = arith.addf %8, %9 : vector<8x128xf32>
    %11 = arith.divf %8, %10 : vector<8x128xf32>
    %12 = tpu.concatenate %11, %11 in 1 : vector<8x128xf32>, vector<8x128xf32> -> vector<8x256xf32>
    %13 = arith.mulf %3, %12 : vector<8x256xf32>
    %14 = arith.truncf %13 : vector<8x256xf32> to vector<8x256xbf16>
    %c0_5 = arith.constant 0 : index
    %c0_6 = arith.constant 0 : index
    %15 = vector.load %arg4[%c0_5, %c0_6] : memref<256x128xbf16, #tpu.memory_space<vmem>>, vector<256x128xbf16>
    %cst_7 = arith.constant dense<0.000000e+00> : vector<8x128xf32>
    %16 = tpu.matmul %14, %15, %cst_7 {dimension_numbers = #tpu.dot_dimension_numbers<[1], [0], [0], [1], [0, 0, 1, 1], [], []>} : vector<8x256xbf16>, vector<256x128xbf16>, vector<8x128xf32> -> vector<8x128xf32>
    %17 = arith.truncf %16 : vector<8x128xf32> to vector<8x128xbf16>
    %c0_8 = arith.constant 0 : index
    %c0_9 = arith.constant 0 : index
    %c0_10 = arith.constant 0 : index
    %18 = vector.load %arg5[%c0_8, %c0_9, %c0_10] : memref<1x8x128xbf16, #tpu.memory_space<vmem>>, vector<1x8x128xbf16>
    %19 = vector.shape_cast %18 : vector<1x8x128xbf16> to vector<8x128xbf16>
    %20 = vector.shape_cast %17 : vector<8x128xbf16> to vector<1x8x128xbf16>
    tpu.vector_store %arg5[%c0_8, %c0_9, %c0_10], %20 {strides = array<i32>} : memref<1x8x128xbf16, #tpu.memory_space<vmem>>, vector<1x8x128xbf16>,
    return
  }
  func.func @transform_0(%arg0: i32, %arg1: i32) -> (i32, i32, i32) {
    %c0_i32 = arith.constant 0 : i32
    %c0_i32_0 = arith.constant 0 : i32
    return %arg0, %arg1, %c0_i32 : i32, i32, i32
  }
  func.func @transform_1(%arg0: i32, %arg1: i32) -> (i32, i32) {
    %c0_i32 = arith.constant 0 : i32
    %c0_i32_0 = arith.constant 0 : i32
    %c0_i32_1 = arith.constant 0 : i32
    return %c0_i32, %c0_i32_0 : i32, i32
  }
  func.func @transform_2(%arg0: i32, %arg1: i32) -> (i32, i32) {
    %c0_i32 = arith.constant 0 : i32
    %c0_i32_0 = arith.constant 0 : i32
    %c0_i32_1 = arith.constant 0 : i32
    return %c0_i32, %c0_i32_0 : i32, i32
  }
  func.func @transform_3(%arg0: i32, %arg1: i32) -> (i32, i32, i32) {
    %c0_i32 = arith.constant 0 : i32
    %c0_i32_0 = arith.constant 0 : i32
    return %arg0, %arg1, %c0_i32 : i32, i32, i32
  }
}

</mosaic_0001>

<llo_original>
// kernel: torch_stft_forward.1
$region0: #{torch_stft_forward.1}
  #allocation0 [shape = 'u32[]', space=smem, size = 0x4, offset = 0x4, fixed_abs, tag = 'smem constant byte address 0x4 - core index']
  #allocation1 [shape = 'u32[72,128]{1,0:T(1,128)}', space=vmem, size = 0x9000, scoped, tag = 'internal scratch']
  %s0 = inlined_call_operand.vmem [shape: bf16[2,8,128], index: 0, kind: input, shape index: {}]
  %s1 = inlined_call_operand.hbm [shape: bf16[128,256], index: 1, kind: input, shape index: {}]
  %s2 = inlined_call_operand.hbm [shape: bf16[256,128], index: 2, kind: input, shape index: {}]
  %s3 = inlined_call_operand.vmem [shape: bf16[2,8,128], index: 3, kind: output, shape index: {}]
  %s4 = sld [smem:[#allocation0]]
  $region53: #{torch_stft_forward.1} parent=0
    _
  %s6 = ssub.s32 1, %s4
  %s7 = scalar_select 0, %s6, %s4
  $region1: #{torch_stft_forward.1} parent=0
    #allocation2 [shape = 'u8[65536]{0}', space=vmem, size = 0x10000, scoped, tag = 'input window, operand 1, single buffered']
    #allocation3 [shape = 's32[2]{0}', space=sflag, size = 0x8, scoped, tag = 'scoped memory for torch_stft_forward.1']
    #allocation4 [shape = 'u8[65536]{0}', space=vmem, size = 0x10000, scoped, tag = 'input window, operand 2, single buffered']
    #allocation5 [shape = 's32[1]{0}', space=sflag, size = 0x4, scoped, tag = 'scoped memory for torch_stft_forward.1']
    %8 = vsyncpa [#allocation3], 0
    %9 = vsyncpa [#allocation5], 0
    loop: start=0, step=1, limit=4
    $region2: #{torch_stft_forward.1} parent=1 // loop_pre_header
      _
    $region3: #{torch_stft_forward.1} parent=1 // loop_header
      %s11 = sphi 0, %s15
      %p12 = scmp.ge.s32.totalorder %s11, 4
      %s18 = sphi 0, %s30
      %s19 = sphi 0, %s26
      %s20 = sphi 0, %s18
      %s21 = sphi 0, %s19
      %s22 = sphi 0, %s20
      %s23 = sphi 0, %s21
      %s35 = sphi 0, %s37
      %s38 = sphi 0, %s35
      %s39 = sphi 0, %s38
      %s55 = sphi 0, %s39
      %s59 = sphi 0, %s59
      %s61 = sphi 0, %s59
      %s62 = sphi 0, %s61
      %s76 = sphi 0, %s62
      %s80 = sphi 0, %s80
      %s82 = sphi 0, %s80
      %s83 = sphi 0, %s82
      %s97 = sphi 0, %s83
      %s105 = sphi 0, %s107
      %s108 = sphi 0, %s105
      %s109 = sphi 0, %s108
      %s125 = sphi 0, %s109
    $region4: #{torch_stft_forward.1} parent=1 // loop_header_branch
      %14 = sbr.rel (%p12) target = $region8
    $region5: #{torch_stft_forward.1} parent=1 // loop_body
      %s16 = ssub.s32 %s11, 1
      %s17 = ssub.s32 %s11, 2
      %s24 = sadd.s32 1, %s19
      %p25 = scmp.ge.s32.totalorder %s24, 1
      %s26 = scalar_select %p25, 0, %s24
      %s27 = sadd.s32 1, %s18
      %s28 = scalar_select %p25, %s27, %s18
      %p29 = scmp.ge.s32.totalorder %s28, 2
      %s30 = scalar_select %p29, 0, %s28
      %s31 = ssub.s32 %s18, %s30
      %s32 = ssub.s32 %s19, %s26
      %s33 = sor.u32 %s31, %s32
      %p34 = scmp.eq.s32.totalorder %s33, 0
      %s36 = sadd.s32 %s35, 1
      %s37 = scalar_select %p34, %s35, %s36
      %p40 = pneg %p34
      %p41 = scmp.eq.s32.totalorder %s11, 1
      %p42 = por %p40, %p41
      %p43 = scmp.ne.s32.totalorder %s35, %s38
      %p44 = scmp.eq.s32.totalorder %s11, 0
      %p45 = por %p43, %p44
      %p46 = scmp.ne.s32.totalorder %s35, %s38
      %p47 = scmp.eq.s32.totalorder %s16, 1
      %p48 = por %p46, %p47
      %p49 = scmp.ne.s32.totalorder %s38, %s39
      %p50 = scmp.eq.s32.totalorder %s16, 0
      %p51 = por %p49, %p50
      %p52 = scmp.ne.s32.totalorder %s38, %s39
      %p53 = scmp.eq.s32.totalorder %s17, 1
      %p54 = por %p52, %p53
      %p56 = scmp.ne.s32.totalorder %s39, %s55
      %p57 = scmp.eq.s32.totalorder %s17, 0
      %p58 = por %p56, %p57
      %s60 = sadd.s32 %s59, 1
      %p63 = scmp.eq.s32.totalorder %s11, 1
      %p64 = scmp.ne.s32.totalorder %s59, %s61
      %p65 = scmp.eq.s32.totalorder %s11, 0
      %p66 = por %p64, %p65
      %p67 = scmp.ne.s32.totalorder %s59, %s61
      %p68 = scmp.eq.s32.totalorder %s16, 1
      %p69 = por %p67, %p68
      %p70 = scmp.ne.s32.totalorder %s61, %s62
      %p71 = scmp.eq.s32.totalorder %s16, 0
      %p72 = por %p70, %p71
      %p73 = scmp.ne.s32.totalorder %s61, %s62
      %p74 = scmp.eq.s32.totalorder %s17, 1
      %p75 = por %p73, %p74
      %p77 = scmp.ne.s32.totalorder %s62, %s76
      %p78 = scmp.eq.s32.totalorder %s17, 0
      %p79 = por %p77, %p78
      %s81 = sadd.s32 %s80, 1
      %p84 = scmp.eq.s32.totalorder %s11, 1
      %p85 = scmp.ne.s32.totalorder %s80, %s82
      %p86 = scmp.eq.s32.totalorder %s11, 0
      %p87 = por %p85, %p86
      %p88 = scmp.ne.s32.totalorder %s80, %s82
      %p89 = scmp.eq.s32.totalorder %s16, 1
      %p90 = por %p88, %p89
      %p91 = scmp.ne.s32.totalorder %s82, %s83
      %p92 = scmp.eq.s32.totalorder %s16, 0
      %p93 = por %p91, %p92
      %p94 = scmp.ne.s32.totalorder %s82, %s83
      %p95 = scmp.eq.s32.totalorder %s17, 1
      %p96 = por %p94, %p95
      %p98 = scmp.ne.s32.totalorder %s83, %s97
      %p99 = scmp.eq.s32.totalorder %s17, 0
      %p100 = por %p98, %p99
      %s101 = ssub.s32 %s18, %s30
      %s102 = ssub.s32 %s19, %s26
      %s103 = sor.u32 %s101, %s102
      %p104 = scmp.eq.s32.totalorder %s103, 0
      %s106 = sadd.s32 %s105, 1
      %s107 = scalar_select %p104, %s105, %s106
      %p110 = pneg %p104
      %p111 = scmp.eq.s32.totalorder %s11, 1
      %p112 = por %p110, %p111
      %p113 = scmp.ne.s32.totalorder %s105, %s108
      %p114 = scmp.eq.s32.totalorder %s11, 0
      %p115 = por %p113, %p114
      %p116 = scmp.ne.s32.totalorder %s105, %s108
      %p117 = scmp.eq.s32.totalorder %s16, 1
      %p118 = por %p116, %p117
      %p119 = scmp.ne.s32.totalorder %s108, %s109
      %p120 = scmp.eq.s32.totalorder %s16, 0
      %p121 = por %p119, %p120
      %p122 = scmp.ne.s32.totalorder %s108, %s109
      %p123 = scmp.eq.s32.totalorder %s17, 1
      %p124 = por %p122, %p123
      %p126 = scmp.ne.s32.totalorder %s109, %s125
      %p127 = scmp.eq.s32.totalorder %s17, 0
      %p128 = por %p126, %p127
      %p129 = scmp.le.s32.totalorder 1, %s11
      %p130 = scmp.lt.s32.totalorder %s11, 3
      %p131 = pnand %p129, %p130
      %p132 = pneg %p131
      // Predicated region
      $region9: #{torch_stft_forward.1} parent=5 // pred_check
        _
      $region10: #{torch_stft_forward.1} parent=5 // pred_check_branch
        %134 = sbr.rel (%p131) target = $region12
      $region11: #{torch_stft_forward.1} parent=5 // pred_region
        %s135 = ssub.s32 %s11, 1
        // Predicated region
        $region13: #{torch_stft_forward.1} parent=11 // pred_check
          %p136 = pneg %p72
        $region14: #{torch_stft_forward.1} parent=11 // pred_check_branch
          %138 = sbr.rel (%p136) target = $region16
        $region15: #{torch_stft_forward.1} parent=11 // pred_region
          %140 = vsyncadd [#allocation3], 0
          %s141 = sshll.u32 %s1, 4
          %s142 = int_to_ptr.hbm [resolvable:$true] %s141
          %s143 = sshll.u32 [#allocation2], 4
          %s144 = int_to_ptr.vmem [resolvable:$true] %s143
          %149 = dma.hbm_to_vmem [thread:$0]  %s142, 2048, %s144, [#allocation3], 128, 128, 8
        $region16: #{torch_stft_forward.1} parent=11 // pred_fallthru
          _
        // Predicated region
        $region17: #{torch_stft_forward.1} parent=11 // pred_check
          %p150 = pneg %p93
        $region18: #{torch_stft_forward.1} parent=11 // pred_check_branch
          %152 = sbr.rel (%p150) target = $region20
        $region19: #{torch_stft_forward.1} parent=11 // pred_region
          %154 = vsyncadd [#allocation5], 0
          %s155 = sshll.u32 %s2, 4
          %s156 = int_to_ptr.hbm [resolvable:$true] %s155
          %s157 = sshll.u32 [#allocation4], 4
          %s158 = int_to_ptr.vmem [resolvable:$true] %s157
          %163 = dma.hbm_to_vmem [thread:$0]  %s156, 2048, %s158, [#allocation5], 64, 64, 4
        $region20: #{torch_stft_forward.1} parent=11 // pred_fallthru
          _
      $region12: #{torch_stft_forward.1} parent=5 // pred_fallthru
        _
      %p164 = scmp.lt.s32.totalorder %s11, 2
      // Predicated region
      $region21: #{torch_stft_forward.1} parent=5 // pred_check
        %p165 = pneg %p164
      $region22: #{torch_stft_forward.1} parent=5 // pred_check_branch
        %167 = sbr.rel (%p165) target = $region24
      $region23: #{torch_stft_forward.1} parent=5 // pred_region
        // Predicated region
        $region25: #{torch_stft_forward.1} parent=23 // pred_check
          %p168 = pneg %p45
        $region26: #{torch_stft_forward.1} parent=23 // pred_check_branch
          %170 = sbr.rel (%p168) target = $region28
        $region27: #{torch_stft_forward.1} parent=23 // pred_region
          %p171 = scmp.lt.s32.totalorder %s18, 1
          %s172 = scalar_select %p171, %s18, 1
          %p173 = scmp.lt.s32.totalorder %s19, 0
          %s174 = scalar_select %p173, %s19, 0
          %s175 = sadd.s32 %s174, %s172
          %s176 = smul.addr %s175, 4
          %s177 = scalar_lea.vmem %s0, %s176
        $region28: #{torch_stft_forward.1} parent=23 // pred_fallthru
          _
      $region24: #{torch_stft_forward.1} parent=5 // pred_fallthru
        _
      %p178 = scmp.le.s32.totalorder 1, %s11
      %p179 = scmp.lt.s32.totalorder %s11, 3
      %p180 = pnand %p178, %p179
      %p181 = pneg %p180
      // Predicated region
      $region29: #{torch_stft_forward.1} parent=5 // pred_check
        _
      $region30: #{torch_stft_forward.1} parent=5 // pred_check_branch
        %183 = sbr.rel (%p180) target = $region32
      $region31: #{torch_stft_forward.1} parent=5 // pred_region
        %s184 = ssub.s32 %s11, 1
        // Predicated region
        $region33: #{torch_stft_forward.1} parent=31 // pred_check
          %p185 = pneg %p72
        $region34: #{torch_stft_forward.1} parent=31 // pred_check_branch
          %187 = sbr.rel (%p185) target = $region36
        $region35: #{torch_stft_forward.1} parent=31 // pred_region
          %189 = dma.done [#allocation3], 2048
        $region36: #{torch_stft_forward.1} parent=31 // pred_fallthru
          _
        // Predicated region
        $region37: #{torch_stft_forward.1} parent=31 // pred_check
          %p190 = pneg %p93
        $region38: #{torch_stft_forward.1} parent=31 // pred_check_branch
          %192 = sbr.rel (%p190) target = $region40
        $region39: #{torch_stft_forward.1} parent=31 // pred_region
          %194 = dma.done [#allocation5], 2048
        $region40: #{torch_stft_forward.1} parent=31 // pred_fallthru
          _
        %p195 = scmp.lt.s32.totalorder %s20, 1
        %s196 = scalar_select %p195, %s20, 1
        %p197 = scmp.lt.s32.totalorder %s21, 0
        %s198 = scalar_select %p197, %s21, 0
        %s199 = sadd.s32 %s198, %s196
        %s200 = smul.addr %s199, 4
        %s201 = scalar_lea.vmem %s0, %s200
        %p202 = pneg %p51
        %p203 = pneg %p48
        %p204 = pneg %p72
        %p205 = pneg %p69
        %p206 = pneg %p93
        %p207 = pneg %p90
        %p208 = pneg %p121
        %p209 = pneg %p118
        %p210 = scmp.lt.s32.totalorder %s20, 1
        %s211 = scalar_select %p210, %s20, 1
        %p212 = scmp.lt.s32.totalorder %s21, 0
        %s213 = scalar_select %p212, %s21, 0
        %s214 = sadd.s32 %s213, %s211
        %s215 = smul.addr %s214, 4
        %s216 = scalar_lea.vmem %s3, %s215
        %p217 = scmp.lt.s32.totalorder %s20, 1
        %s218 = scalar_select %p217, %s20, 1
        %p219 = scmp.lt.s32.totalorder %s21, 0
        %s220 = scalar_select %p219, %s21, 0
        %s221 = sadd.s32 %s220, %s218
        %s222 = smul.addr %s221, 4
        %s223 = scalar_lea.vmem %s0, %s222
        %p224 = scmp.lt.s32.totalorder %s20, 1
        %s225 = scalar_select %p224, %s20, 1
        %p226 = scmp.lt.s32.totalorder %s21, 0
        %s227 = scalar_select %p226, %s21, 0
        %s228 = sadd.s32 %s227, %s225
        %s229 = smul.addr %s228, 4
        %s230 = scalar_lea.vmem %s3, %s229
        %v231 = vld [vmem:[%s223] sm:$0xf]
        %v232 = vld [vmem:[#allocation2] sm:$0xff]
        %v233 = vld [vmem:[#allocation2 + $0x8] sm:$0xff]
        %v234 = vld [vmem:[#allocation2 + $0x10] sm:$0xff]
        %v235 = vld [vmem:[#allocation2 + $0x18] sm:$0xff]
        %v236 = vld [vmem:[#allocation2 + $0x20] sm:$0xff]
        %v237 = vld [vmem:[#allocation2 + $0x28] sm:$0xff]
        %v238 = vld [vmem:[#allocation2 + $0x30] sm:$0xff]
        %v239 = vld [vmem:[#allocation2 + $0x38] sm:$0xff]
        %v240 = vld [vmem:[#allocation2 + $0x40] sm:$0xff]
        %v241 = vld [vmem:[#allocation2 + $0x48] sm:$0xff]
        %v242 = vld [vmem:[#allocation2 + $0x50] sm:$0xff]
        %v243 = vld [vmem:[#allocation2 + $0x58] sm:$0xff]
        %v244 = vld [vmem:[#allocation2 + $0x60] sm:$0xff]
        %v245 = vld [vmem:[#allocation2 + $0x68] sm:$0xff]
        %v246 = vld [vmem:[#allocation2 + $0x70] sm:$0xff]
        %v247 = vld [vmem:[#allocation2 + $0x78] sm:$0xff]
        %v264 = vunpack.c.l.b16 %v232
        %v265 = vunpack.c.h.b16 %v232
        %v266 = vunpack.c.l.b16 %v233
        %v267 = vunpack.c.h.b16 %v233
        %v268 = vunpack.c.l.b16 %v234
        %v269 = vunpack.c.h.b16 %v234
        %v270 = vunpack.c.l.b16 %v235
        %v271 = vunpack.c.h.b16 %v235
        %v272 = vunpack.c.l.b16 %v236
        %v273 = vunpack.c.h.b16 %v236
        %v274 = vunpack.c.l.b16 %v237
        %v275 = vunpack.c.h.b16 %v237
        %v276 = vunpack.c.l.b16 %v238
        %v277 = vunpack.c.h.b16 %v238
        %v278 = vunpack.c.l.b16 %v239
        %v279 = vunpack.c.h.b16 %v239
        %v280 = vunpack.c.l.b16 %v240
        %v281 = vunpack.c.h.b16 %v240
        %v282 = vunpack.c.l.b16 %v241
        %v283 = vunpack.c.h.b16 %v241
        %v284 = vunpack.c.l.b16 %v242
        %v285 = vunpack.c.h.b16 %v242
        %v286 = vunpack.c.l.b16 %v243
        %v287 = vunpack.c.h.b16 %v243
        %v288 = vunpack.c.l.b16 %v244
        %v289 = vunpack.c.h.b16 %v244
        %v290 = vunpack.c.l.b16 %v245
        %v291 = vunpack.c.h.b16 %v245
        %v292 = vunpack.c.l.b16 %v246
        %v293 = vunpack.c.h.b16 %v246
        %v294 = vunpack.c.l.b16 %v247
        %v295 = vunpack.c.h.b16 %v247
        %v296 = vpack.c.b16 %v266, %v264
        %v297 = vpack.c.b16 %v267, %v265
        %v298 = vpack.c.b16 %v270, %v268
        %v299 = vpack.c.b16 %v271, %v269
        %v300 = vpack.c.b16 %v274, %v272
        %v301 = vpack.c.b16 %v275, %v273
        %v302 = vpack.c.b16 %v278, %v276
        %v303 = vpack.c.b16 %v279, %v277
        %v304 = vpack.c.b16 %v282, %v280
        %v305 = vpack.c.b16 %v283, %v281
        %v306 = vpack.c.b16 %v286, %v284
        %v307 = vpack.c.b16 %v287, %v285
        %v308 = vpack.c.b16 %v290, %v288
        %v309 = vpack.c.b16 %v291, %v289
        %v310 = vpack.c.b16 %v294, %v292
        %v311 = vpack.c.b16 %v295, %v293
        %328 = vmatpush.bf16.msra.mxu0 %v310
        %329 = vmatpush.bf16.msra.mxu0 %v308
        %330 = vmatpush.bf16.msra.mxu0 %v306
        %331 = vmatpush.bf16.msra.mxu0 %v304
        %332 = vmatpush.bf16.msra.mxu0 %v302
        %333 = vmatpush.bf16.msra.mxu0 %v300
        %334 = vmatpush.bf16.msra.mxu0 %v298
        %335 = vmatpush.bf16.msra.mxu0 %v296
        %336 = vmatmul.bf16.gmra.mxu0 %v231
        %v337 = vpop.f32.mrf.mxu0
        %v338 = vadd.f32 0.0, %v337
        %v339 = vpop.f32.mrf.mxu0
        %340 = vdwg.mxu0
        %341 = vmatpush.bf16.msra.mxu0 %v311
        %342 = vmatpush.bf16.msra.mxu0 %v309
        %343 = vmatpush.bf16.msra.mxu0 %v307
        %344 = vmatpush.bf16.msra.mxu0 %v305
        %345 = vmatpush.bf16.msra.mxu0 %v303
        %346 = vmatpush.bf16.msra.mxu0 %v301
        %347 = vmatpush.bf16.msra.mxu0 %v299
        %348 = vmatpush.bf16.msra.mxu0 %v297
        %349 = vmatmul.bf16.gmra.mxu0 %v231
        %v350 = vpop.f32.mrf.mxu0
        %v351 = vadd.f32 0.0, %v350
        %v352 = vpop.f32.mrf.mxu0
        %353 = vdwg.mxu0
        %v354 = vmul.f32 %v338, %v338
        %v355 = vmul.f32 %v351, %v351
        %v356 = vadd.f32 %v354, %v355
        %v357 = vadd.f32 %v356, 1e-30
        %v358 = vrcp.pop %v357
        %v359 = vmul.f32 %v357, %v358
        %v360 = vsub.f32 1.0, %v359
        %v361 = vmul.f32 %v358, %v360
        %v362 = vadd.f32 %v358, %v361
        %vm363 = vweird.f32 %v357
        %vm364 = vweird.f32 %v358
        %vm365 = vmor %vm363, %vm364
        %v366 = vsel %vm365, %v358, %v362
        %v367 = vand.u32 2147483647, %v357
        %vm368 = vcmp.eq.f32.partialorder %v367, 8.507059e+37
        %v369 = vand.u32 %v357, 2147483648
        %v370 = vor.u32 1.1754944e-38, %v369
        %v371 = vsel %vm368, %v370, %v366
        %v372 = vmul.f32 %v356, %v371
        %v373 = vmul.f32 %v338, %v372
        %v374 = vmul.f32 %v351, %v372
        %v375 = vpack.c.bf16 %v373, %v373
        %v376 = vpack.c.bf16 %v374, %v374
        %v377 = vld [vmem:[#allocation4] sm:$0xf]
        %v378 = vld [vmem:[#allocation4 + $0x4] sm:$0xf]
        %v379 = vld [vmem:[#allocation4 + $0x8] sm:$0xf]
        %v380 = vld [vmem:[#allocation4 + $0xc] sm:$0xf]
        %v381 = vld [vmem:[#allocation4 + $0x10] sm:$0xf]
        %v382 = vld [vmem:[#allocation4 + $0x14] sm:$0xf]
        %v383 = vld [vmem:[#allocation4 + $0x18] sm:$0xf]
        %v384 = vld [vmem:[#allocation4 + $0x1c] sm:$0xf]
        %v385 = vld [vmem:[#allocation4 + $0x20] sm:$0xf]
        %v386 = vld [vmem:[#allocation4 + $0x24] sm:$0xf]
        %v387 = vld [vmem:[#allocation4 + $0x28] sm:$0xf]
        %v388 = vld [vmem:[#allocation4 + $0x2c] sm:$0xf]
        %v389 = vld [vmem:[#allocation4 + $0x30] sm:$0xf]
        %v390 = vld [vmem:[#allocation4 + $0x34] sm:$0xf]
        %v391 = vld [vmem:[#allocation4 + $0x38] sm:$0xf]
        %v392 = vld [vmem:[#allocation4 + $0x3c] sm:$0xf]
        %v393 = vld [vmem:[#allocation4 + $0x40] sm:$0xf]
        %v394 = vld [vmem:[#allocation4 + $0x44] sm:$0xf]
        %v395 = vld [vmem:[#allocation4 + $0x48] sm:$0xf]
        %v396 = vld [vmem:[#allocation4 + $0x4c] sm:$0xf]
        %v397 = vld [vmem:[#allocation4 + $0x50] sm:$0xf]
        %v398 = vld [vmem:[#allocation4 + $0x54] sm:$0xf]
        %v399 = vld [vmem:[#allocation4 + $0x58] sm:$0xf]
        %v400 = vld [vmem:[#allocation4 + $0x5c] sm:$0xf]
        %v401 = vld [vmem:[#allocation4 + $0x60] sm:$0xf]
        %v402 = vld [vmem:[#allocation4 + $0x64] sm:$0xf]
        %v403 = vld [vmem:[#allocation4 + $0x68] sm:$0xf]
        %v404 = vld [vmem:[#allocation4 + $0x6c] sm:$0xf]
        %v405 = vld [vmem:[#allocation4 + $0x70] sm:$0xf]
        %v406 = vld [vmem:[#allocation4 + $0x74] sm:$0xf]
        %v407 = vld [vmem:[#allocation4 + $0x78] sm:$0xf]
        %v408 = vld [vmem:[#allocation4 + $0x7c] sm:$0xf]
        %v441 = vunpack.c.l.b16 %v377
        %v442 = vunpack.c.l.b16 %v378
        %v443 = vunpack.c.l.b16 %v379
        %v444 = vunpack.c.l.b16 %v380
        %v445 = vunpack.c.l.b16 %v381
        %v446 = vunpack.c.l.b16 %v382
        %v447 = vunpack.c.l.b16 %v383
        %v448 = vunpack.c.l.b16 %v384
        %v449 = vunpack.c.l.b16 %v385
        %v450 = vunpack.c.l.b16 %v386
        %v451 = vunpack.c.l.b16 %v387
        %v452 = vunpack.c.l.b16 %v388
        %v453 = vunpack.c.l.b16 %v389
        %v454 = vunpack.c.l.b16 %v390
        %v455 = vunpack.c.l.b16 %v391
        %v456 = vunpack.c.l.b16 %v392
        %v457 = vunpack.c.l.b16 %v393
        %v458 = vunpack.c.l.b16 %v394
        %v459 = vunpack.c.l.b16 %v395
        %v460 = vunpack.c.l.b16 %v396
        %v461 = vunpack.c.l.b16 %v397
        %v462 = vunpack.c.l.b16 %v398
        %v463 = vunpack.c.l.b16 %v399
        %v464 = vunpack.c.l.b16 %v400
        %v465 = vunpack.c.l.b16 %v401
        %v466 = vunpack.c.l.b16 %v402
        %v467 = vunpack.c.l.b16 %v403
        %v468 = vunpack.c.l.b16 %v404
        %v469 = vunpack.c.l.b16 %v405
        %v470 = vunpack.c.l.b16 %v406
        %v471 = vunpack.c.l.b16 %v407
        %v472 = vunpack.c.l.b16 %v408
        %v473 = vpack.c.b16 %v442, %v441
        %v474 = vpack.c.b16 %v444, %v443
        %v475 = vpack.c.b16 %v446, %v445
        %v476 = vpack.c.b16 %v448, %v447
        %v477 = vpack.c.b16 %v450, %v449
        %v478 = vpack.c.b16 %v452, %v451
        %v479 = vpack.c.b16 %v454, %v453
        %v480 = vpack.c.b16 %v456, %v455
        %v481 = vpack.c.b16 %v458, %v457
        %v482 = vpack.c.b16 %v460, %v459
        %v483 = vpack.c.b16 %v462, %v461
        %v484 = vpack.c.b16 %v464, %v463
        %v485 = vpack.c.b16 %v466, %v465
        %v486 = vpack.c.b16 %v468, %v467
        %v487 = vpack.c.b16 %v470, %v469
        %v488 = vpack.c.b16 %v472, %v471
        %505 = vmatpush.bf16.msra.mxu0 %v480
        %506 = vmatpush.bf16.msra.mxu0 %v479
        %507 = vmatpush.bf16.msra.mxu0 %v478
        %508 = vmatpush.bf16.msra.mxu0 %v477
        %509 = vmatpush.bf16.msra.mxu0 %v476
        %510 = vmatpush.bf16.msra.mxu0 %v475
        %511 = vmatpush.bf16.msra.mxu0 %v474
        %512 = vmatpush.bf16.msra.mxu0 %v473
        %513 = vmatmul.bf16.gmra.mxu0 %v375
        %v514 = vpop.f32.mrf.mxu0
        %v515 = vadd.f32 0.0, %v514
        %v516 = vpop.f32.mrf.mxu0
        %517 = vdwg.mxu0
        %518 = vmatpush.bf16.msra.mxu0 %v488
        %519 = vmatpush.bf16.msra.mxu0 %v487
        %520 = vmatpush.bf16.msra.mxu0 %v486
        %521 = vmatpush.bf16.msra.mxu0 %v485
        %522 = vmatpush.bf16.msra.mxu0 %v484
        %523 = vmatpush.bf16.msra.mxu0 %v483
        %524 = vmatpush.bf16.msra.mxu0 %v482
        %525 = vmatpush.bf16.msra.mxu0 %v481
        %526 = vmatmul.bf16.gmra.mxu0 %v376
        %v527 = vpop.f32.mrf.mxu0
        %v528 = vadd.f32 %v515, %v527
        %v529 = vpop.f32.mrf.mxu0
        %530 = vdwg.mxu0
        %v531 = vpack.c.bf16 %v528, %v528
        %532 = vst [vmem:[%s230] sm:$0xf] %v531
        %p533 = scmp.lt.s32.totalorder %s20, 1
        %s534 = scalar_select %p533, %s20, 1
        %p535 = scmp.lt.s32.totalorder %s21, 0
        %s536 = scalar_select %p535, %s21, 0
        %s537 = sadd.s32 %s536, %s534
        %s538 = smul.addr %s537, 4
        %s539 = scalar_lea.vmem %s3, %s538
        // Predicated region
        $region41: #{torch_stft_forward.1} parent=31 // pred_check
          %p540 = pneg %p118
        $region42: #{torch_stft_forward.1} parent=31 // pred_check_branch
          %542 = sbr.rel (%p540) target = $region44
        $region43: #{torch_stft_forward.1} parent=31 // pred_region
          _
        $region44: #{torch_stft_forward.1} parent=31 // pred_fallthru
          _
      $region32: #{torch_stft_forward.1} parent=5 // pred_fallthru
        _
      %p543 = scmp.le.s32.totalorder 2, %s11
      // Predicated region
      $region45: #{torch_stft_forward.1} parent=5 // pred_check
        %p544 = pneg %p543
      $region46: #{torch_stft_forward.1} parent=5 // pred_check_branch
        %546 = sbr.rel (%p544) target = $region48
      $region47: #{torch_stft_forward.1} parent=5 // pred_region
        %s547 = ssub.s32 %s11, 2
        // Predicated region
        $region49: #{torch_stft_forward.1} parent=47 // pred_check
          %p548 = pneg %p124
        $region50: #{torch_stft_forward.1} parent=47 // pred_check_branch
          %550 = sbr.rel (%p548) target = $region52
        $region51: #{torch_stft_forward.1} parent=47 // pred_region
          %p551 = scmp.lt.s32.totalorder %s22, 1
          %s552 = scalar_select %p551, %s22, 1
          %p553 = scmp.lt.s32.totalorder %s23, 0
          %s554 = scalar_select %p553, %s23, 0
          %s555 = sadd.s32 %s554, %s552
          %s556 = smul.addr %s555, 4
          %s557 = scalar_lea.vmem %s3, %s556
        $region52: #{torch_stft_forward.1} parent=47 // pred_fallthru
          _
      $region48: #{torch_stft_forward.1} parent=5 // pred_fallthru
        _
    $region6: #{torch_stft_forward.1} parent=1 // loop_footer
      %s15 = sadd.s32 1, %s11
    $region7: #{torch_stft_forward.1} parent=1 // loop_footer_branch
      %10 = sbr.rel target = $region3
    $region8: #{torch_stft_forward.1} parent=1 // loop_exit
      _
    %558 = vsyncpa [#allocation3], 1
    %s559 = scalar_lea.sflag [#allocation3], 1
    %560 = vsyncpa %s559, 1
    %561 = vsyncpa [#allocation5], 1

</llo_original>
